<compile_context>
chip_gen: v6e
topology: v6e:2x2x1
jax: 0.10.0
libtpu: 0.0.40
codegen_flags: <defaults>
</compile_context>

<pallas_src>
import functools

import jax
import jax.numpy as jnp
from jax.experimental import pallas as pl
from jax.experimental.pallas import tpu as pltpu

NUM_LAYERS = 8


def _round_up(n, m):
    return ((n + m - 1) // m) * m


def _make_mapping_kernel(z_dim):
    """z_dim: number of *real* input features (PixelNorm divisor), baked in."""
    inv_zdim = 1.0 / float(z_dim)

    def kernel(x_ref, w_ref, b_ref, o_ref):
        # x_ref: [TB, P]   w_ref: [8, P, P] (WS scale pre-folded)   b_ref: [8, 1, P]
        x = x_ref[...].astype(jnp.float32)

        # PixelNorm over the real feature axis. Padded lanes are zero, so
        # sum(x*x) over the padded width == sum over the real z_dim features.
        ssq = jnp.sum(x * x, axis=1, keepdims=True)          # XLU reduce
        x = x * jax.lax.rsqrt(ssq * inv_zdim + 1e-8)          # EUP rsqrt

        # 8 WSLinear layers (scale already folded into w), ReLU between all but last.
        for i in range(NUM_LAYERS):
            w = w_ref[i]                                      # [P, P], VMEM-resident
            b = b_ref[i].astype(jnp.float32)                  # [1, P]
            y = jnp.dot(x.astype(w.dtype), w,
                        preferred_element_type=jnp.float32) + b
            x = jnp.maximum(y, 0.0) if i < NUM_LAYERS - 1 else y

        o_ref[...] = x.astype(o_ref.dtype)

    return kernel


def init_params(key, z_dim, w_dim):
    """Synthetic init matching the module: weights ~ N(0,1), biases = 0."""
    in_feats = [z_dim] + [w_dim] * (NUM_LAYERS - 1)
    out_feats = [w_dim] * NUM_LAYERS
    keys = jax.random.split(key, NUM_LAYERS)
    weights = [
        jax.random.normal(keys[i], (in_feats[i], out_feats[i]), dtype=jnp.float32)
        for i in range(NUM_LAYERS)
    ]
    biases = [jnp.zeros((out_feats[i],), dtype=jnp.float32) for i in range(NUM_LAYERS)]
    return weights, biases


def prepare_params(weights, biases, z_dim, w_dim, weight_dtype=jnp.float32):
    """One-time parameter transform: fold WS scales into weights, zero-pad features
    to a lane-dense multiple of 128, pack into single arrays.

    weights[i]: [in_i, out_i] (in_0 = z_dim, else w_dim; out_i = w_dim).
    Returns (w_packed [8, P, P], b_packed [8, 1, P]).
    On v6e/v7x pass weight_dtype=jnp.bfloat16 for ~2x MXU throughput (f32 accum kept).
    """
    P = _round_up(max(z_dim, w_dim), 128)
    in_feats = [z_dim] + [w_dim] * (NUM_LAYERS - 1)

    w_list, b_list = [], []
    for i in range(NUM_LAYERS):
        scale = (2.0 / in_feats[i]) ** 0.5
        w = weights[i].astype(jnp.float32) * scale            # fold WS scale once
        w = jnp.pad(w, ((0, P - w.shape[0]), (0, P - w.shape[1])))
        w_list.append(w.astype(weight_dtype))
        b = jnp.pad(biases[i].astype(jnp.float32), (0, P - biases[i].shape[0]))
        b_list.append(b.reshape(1, P))

    return jnp.stack(w_list), jnp.stack(b_list)


def mapping_network(x, w_packed, b_packed, z_dim, w_dim):
    """x: [B, z_dim]. w_packed: [8, P, P] (scale-folded, padded). b_packed: [8, 1, P]."""
    B, zf = x.shape
    P = w_packed.shape[-1]

    # Batch tile: >= 8 (f32 sublane), 128 when the batch is large enough.
    TB = 128 if B >= 128 else max(8, _round_up(B, 8))
    B_pad = _round_up(B, TB)

    # Zero-pad batch and features (padded rows/lanes are sliced off at the end).
    x_p = jnp.pad(x, ((0, B_pad - B), (0, P - zf)))

    # VMEM budget: resident weights/biases (+pipeline copy) + double-buffered
    # activation in/out tiles, with headroom; capped below v7x's 64 MiB.
    w_bytes = jnp.dtype(w_packed.dtype).itemsize
    resident = (2 * NUM_LAYERS * P * P * w_bytes
                + 2 * NUM_LAYERS * P * 4
                + 2 * 2 * TB * P * jnp.dtype(x_p.dtype).itemsize)
    vmem_limit = int(min(max(2 * resident + (4 << 20), 16 << 20), 56 << 20))
    # TODO(synk): for very large w_dim (>=1024) switch weights to memory_space=pl.ANY
    # with a one-time manual DMA into VMEM scratch instead of resident BlockSpecs.

    kernel = _make_mapping_kernel(z_dim)

    out = pl.pallas_call(
        kernel,
        out_shape=jax.ShapeDtypeStruct((B_pad, P), x.dtype),
        grid_spec=pltpu.PrefetchScalarGridSpec(
            num_scalar_prefetch=0,
            grid=(B_pad // TB,),
            in_specs=[
                pl.BlockSpec((TB, P), lambda i: (i, 0)),                  # x tile
                pl.BlockSpec((NUM_LAYERS, P, P), lambda i: (0, 0, 0)),    # weights, resident
                pl.BlockSpec((NUM_LAYERS, 1, P), lambda i: (0, 0, 0)),    # biases, resident
            ],
            out_specs=pl.BlockSpec((TB, P), lambda i: (i, 0)),
        ),
        compiler_params=pltpu.CompilerParams(
            dimension_semantics=("parallel",),
            vmem_limit_bytes=vmem_limit,
        ),
    )(x_p, w_packed, b_packed)

    return out[:B, :w_dim]


def reference(x, weights, biases, z_dim, w_dim):
    """Pure-JAX reference mirroring the PyTorch forward (unpadded params)."""
    in_feats = [z_dim] + [w_dim] * (NUM_LAYERS - 1)
    h = x / jnp.sqrt(jnp.mean(x ** 2, axis=1, keepdims=True) + 1e-8)
    for i in range(NUM_LAYERS):
        scale = (2.0 / in_feats[i]) ** 0.5
        h = (h * scale) @ weights[i] + biases[i]
        if i < NUM_LAYERS - 1:
            h = jnp.maximum(h, 0.0)
    return h


if __name__ == "__main__":
    B, Z_DIM, W_DIM = 8, 32, 32

    key = jax.random.PRNGKey(0)
    kx, kp = jax.random.split(key)
    x = jax.random.normal(kx, (B, Z_DIM), dtype=jnp.float32)
    weights, biases = init_params(kp, Z_DIM, W_DIM)

    # One-time parameter prep (fold WS scale, pad to lane-dense P, pack).
    w_packed, b_packed = prepare_params(weights, biases, Z_DIM, W_DIM,
                                        weight_dtype=jnp.float32)

    fwd = jax.jit(functools.partial(mapping_network, z_dim=Z_DIM, w_dim=W_DIM))
    out = fwd(x, w_packed, b_packed)
    out = jax.block_until_ready(out)

    ref = reference(x, weights, biases, Z_DIM, W_DIM)
    assert out.shape == (B, W_DIM)
    assert jnp.allclose(out, ref, atol=1e-4, rtol=1e-4), "mismatch vs reference"

    print("KERNEL_OK")
</pallas_src>

<mosaic_0001>
module attributes {stable_mosaic.version = 11 : i64} {
  func.func @kernel(%arg0: i32, %arg1: memref<8x128xf32, #tpu.memory_space<vmem>>, %arg2: memref<8x128x128xf32, #tpu.memory_space<vmem>>, %arg3: memref<8x1x128xf32, #tpu.memory_space<vmem>>, %arg4: memref<8x128xf32, #tpu.memory_space<vmem>>) attributes {dimension_semantics = [#tpu.dimension_semantics<parallel>], iteration_bounds = array<i64: 1>, scalar_prefetch = 0 : i64, scratch_operands = 0 : i64, tpu.core_type = #tpu.core_type<tc>, window_params = [{transform_indices = @transform_0, window_bounds = array<i64: 8, 128>}, {pipeline_mode = #tpu.pipeline_mode<synchronous>, transform_indices = @transform_1, window_bounds = array<i64: 8, 128, 128>}, {pipeline_mode = #tpu.pipeline_mode<synchronous>, transform_indices = @transform_2, window_bounds = array<i64: 8, 1, 128>}, {transform_indices = @transform_3, window_bounds = array<i64: 8, 128>}]} {
    %c0 = arith.constant 0 : index
    %c0_0 = arith.constant 0 : index
    %0 = vector.load %arg1[%c0, %c0_0] : memref<8x128xf32, #tpu.memory_space<vmem>>, vector<8x128xf32>
    %1 = arith.mulf %0, %0 : vector<8x128xf32>
    %cst = arith.constant dense<0.000000e+00> : vector<8xf32>
    %2 = vector.multi_reduction <add>, %1, %cst [1] : vector<8x128xf32> to vector<8xf32>
    %3 = vector.shape_cast %2 : vector<8xf32> to vector<8x1xf32>
    %cst_1 = arith.constant 3.125000e-02 : f32
    %4 = vector.broadcast %cst_1 : f32 to vector<8x1xf32>
    %5 = arith.mulf %3, %4 : vector<8x1xf32>
    %cst_2 = arith.constant 9.99999993E-9 : f32
    %6 = vector.broadcast %cst_2 : f32 to vector<8x1xf32>
    %7 = arith.addf %5, %6 : vector<8x1xf32>
    %8 = math.rsqrt %7 : vector<8x1xf32>
    %9 = vector.broadcast %8 : vector<8x1xf32> to vector<8x128xf32>
    %10 = arith.mulf %0, %9 : vector<8x128xf32>
    %c0_3 = arith.constant 0 : index
    %c0_4 = arith.constant 0 : index
    %c0_5 = arith.constant 0 : index
    %11 = vector.load %arg2[%c0_3, %c0_4, %c0_5] : memref<8x128x128xf32, #tpu.memory_space<vmem>>, vector<1x128x128xf32>
    %12 = vector.shape_cast %11 : vector<1x128x128xf32> to vector<128x128xf32>
    %c0_6 = arith.constant 0 : index
    %c0_7 = arith.constant 0 : index
    %c0_8 = arith.constant 0 : index
    %13 = vector.load %arg3[%c0_6, %c0_7, %c0_8] : memref<8x1x128xf32, #tpu.memory_space<vmem>>, vector<1x1x128xf32>
    %14 = vector.shape_cast %13 : vector<1x1x128xf32> to vector<1x128xf32>
    %cst_9 = arith.constant dense<0.000000e+00> : vector<8x128xf32>
    %15 = tpu.matmul %10, %12, %cst_9 {dimension_numbers = #tpu.dot_dimension_numbers<[1], [0], [0], [1], [0, 0, 1, 1], [], []>} : vector<8x128xf32>, vector<128x128xf32>, vector<8x128xf32> -> vector<8x128xf32>
    %16 = vector.broadcast %14 : vector<1x128xf32> to vector<8x128xf32>
    %17 = arith.addf %15, %16 : vector<8x128xf32>
    %cst_10 = arith.constant 0.000000e+00 : f32
    %18 = vector.broadcast %cst_10 : f32 to vector<8x128xf32>
    %19 = arith.maximumf %17, %18 : vector<8x128xf32>
    %c1 = arith.constant 1 : index
    %c0_11 = arith.constant 0 : index
    %c0_12 = arith.constant 0 : index
    %20 = vector.load %arg2[%c1, %c0_11, %c0_12] : memref<8x128x128xf32, #tpu.memory_space<vmem>>, vector<1x128x128xf32>
    %21 = vector.shape_cast %20 : vector<1x128x128xf32> to vector<128x128xf32>
    %c1_13 = arith.constant 1 : index
    %c0_14 = arith.constant 0 : index
    %c0_15 = arith.constant 0 : index
    %22 = vector.load %arg3[%c1_13, %c0_14, %c0_15] : memref<8x1x128xf32, #tpu.memory_space<vmem>>, vector<1x1x128xf32>
    %23 = vector.shape_cast %22 : vector<1x1x128xf32> to vector<1x128xf32>
    %cst_16 = arith.constant dense<0.000000e+00> : vector<8x128xf32>
    %24 = tpu.matmul %19, %21, %cst_16 {dimension_numbers = #tpu.dot_dimension_numbers<[1], [0], [0], [1], [0, 0, 1, 1], [], []>} : vector<8x128xf32>, vector<128x128xf32>, vector<8x128xf32> -> vector<8x128xf32>
    %25 = vector.broadcast %23 : vector<1x128xf32> to vector<8x128xf32>
    %26 = arith.addf %24, %25 : vector<8x128xf32>
    %cst_17 = arith.constant 0.000000e+00 : f32
    %27 = vector.broadcast %cst_17 : f32 to vector<8x128xf32>
    %28 = arith.maximumf %26, %27 : vector<8x128xf32>
    %c2 = arith.constant 2 : index
    %c0_18 = arith.constant 0 : index
    %c0_19 = arith.constant 0 : index
    %29 = vector.load %arg2[%c2, %c0_18, %c0_19] : memref<8x128x128xf32, #tpu.memory_space<vmem>>, vector<1x128x128xf32>
    %30 = vector.shape_cast %29 : vector<1x128x128xf32> to vector<128x128xf32>
    %c2_20 = arith.constant 2 : index
    %c0_21 = arith.constant 0 : index
    %c0_22 = arith.constant 0 : index
    %31 = vector.load %arg3[%c2_20, %c0_21, %c0_22] : memref<8x1x128xf32, #tpu.memory_space<vmem>>, vector<1x1x128xf32>
    %32 = vector.shape_cast %31 : vector<1x1x128xf32> to vector<1x128xf32>
    %cst_23 = arith.constant dense<0.000000e+00> : vector<8x128xf32>
    %33 = tpu.matmul %28, %30, %cst_23 {dimension_numbers = #tpu.dot_dimension_numbers<[1], [0], [0], [1], [0, 0, 1, 1], [], []>} : vector<8x128xf32>, vector<128x128xf32>, vector<8x128xf32> -> vector<8x128xf32>
    %34 = vector.broadcast %32 : vector<1x128xf32> to vector<8x128xf32>
    %35 = arith.addf %33, %34 : vector<8x128xf32>
    %cst_24 = arith.constant 0.000000e+00 : f32
    %36 = vector.broadcast %cst_24 : f32 to vector<8x128xf32>
    %37 = arith.maximumf %35, %36 : vector<8x128xf32>
    %c3 = arith.constant 3 : index
    %c0_25 = arith.constant 0 : index
    %c0_26 = arith.constant 0 : index
    %38 = vector.load %arg2[%c3, %c0_25, %c0_26] : memref<8x128x128xf32, #tpu.memory_space<vmem>>, vector<1x128x128xf32>
    %39 = vector.shape_cast %38 : vector<1x128x128xf32> to vector<128x128xf32>
    %c3_27 = arith.constant 3 : index
    %c0_28 = arith.constant 0 : index
    %c0_29 = arith.constant 0 : index
    %40 = vector.load %arg3[%c3_27, %c0_28, %c0_29] : memref<8x1x128xf32, #tpu.memory_space<vmem>>, vector<1x1x128xf32>
    %41 = vector.shape_cast %40 : vector<1x1x128xf32> to vector<1x128xf32>
    %cst_30 = arith.constant dense<0.000000e+00> : vector<8x128xf32>
    %42 = tpu.matmul %37, %39, %cst_30 {dimension_numbers = #tpu.dot_dimension_numbers<[1], [0], [0], [1], [0, 0, 1, 1], [], []>} : vector<8x128xf32>, vector<128x128xf32>, vector<8x128xf32> -> vector<8x128xf32>
    %43 = vector.broadcast %41 : vector<1x128xf32> to vector<8x128xf32>
    %44 = arith.addf %42, %43 : vector<8x128xf32>
    %cst_31 = arith.constant 0.000000e+00 : f32
    %45 = vector.broadcast %cst_31 : f32 to vector<8x128xf32>
    %46 = arith.maximumf %44, %45 : vector<8x128xf32>
    %c4 = arith.constant 4 : index
    %c0_32 = arith.constant 0 : index
    %c0_33 = arith.constant 0 : index
    %47 = vector.load %arg2[%c4, %c0_32, %c0_33] : memref<8x128x128xf32, #tpu.memory_space<vmem>>, vector<1x128x128xf32>
    %48 = vector.shape_cast %47 : vector<1x128x128xf32> to vector<128x128xf32>
    %c4_34 = arith.constant 4 : index
    %c0_35 = arith.constant 0 : index
    %c0_36 = arith.constant 0 : index
    %49 = vector.load %arg3[%c4_34, %c0_35, %c0_36] : memref<8x1x128xf32, #tpu.memory_space<vmem>>, vector<1x1x128xf32>
    %50 = vector.shape_cast %49 : vector<1x1x128xf32> to vector<1x128xf32>
    %cst_37 = arith.constant dense<0.000000e+00> : vector<8x128xf32>
    %51 = tpu.matmul %46, %48, %cst_37 {dimension_numbers = #tpu.dot_dimension_numbers<[1], [0], [0], [1], [0, 0, 1, 1], [], []>} : vector<8x128xf32>, vector<128x128xf32>, vector<8x128xf32> -> vector<8x128xf32>
    %52 = vector.broadcast %50 : vector<1x128xf32> to vector<8x128xf32>
    %53 = arith.addf %51, %52 : vector<8x128xf32>
    %cst_38 = arith.constant 0.000000e+00 : f32
    %54 = vector.broadcast %cst_38 : f32 to vector<8x128xf32>
    %55 = arith.maximumf %53, %54 : vector<8x128xf32>
    %c5 = arith.constant 5 : index
    %c0_39 = arith.constant 0 : index
    %c0_40 = arith.constant 0 : index
    %56 = vector.load %arg2[%c5, %c0_39, %c0_40] : memref<8x128x128xf32, #tpu.memory_space<vmem>>, vector<1x128x128xf32>
    %57 = vector.shape_cast %56 : vector<1x128x128xf32> to vector<128x128xf32>
    %c5_41 = arith.constant 5 : index
    %c0_42 = arith.constant 0 : index
    %c0_43 = arith.constant 0 : index
    %58 = vector.load %arg3[%c5_41, %c0_42, %c0_43] : memref<8x1x128xf32, #tpu.memory_space<vmem>>, vector<1x1x128xf32>
    %59 = vector.shape_cast %58 : vector<1x1x128xf32> to vector<1x128xf32>
    %cst_44 = arith.constant dense<0.000000e+00> : vector<8x128xf32>
    %60 = tpu.matmul %55, %57, %cst_44 {dimension_numbers = #tpu.dot_dimension_numbers<[1], [0], [0], [1], [0, 0, 1, 1], [], []>} : vector<8x128xf32>, vector<128x128xf32>, vector<8x128xf32> -> vector<8x128xf32>
    %61 = vector.broadcast %59 : vector<1x128xf32> to vector<8x128xf32>
    %62 = arith.addf %60, %61 : vector<8x128xf32>
    %cst_45 = arith.constant 0.000000e+00 : f32
    %63 = vector.broadcast %cst_45 : f32 to vector<8x128xf32>
    %64 = arith.maximumf %62, %63 : vector<8x128xf32>
    %c6 = arith.constant 6 : index
    %c0_46 = arith.constant 0 : index
    %c0_47 = arith.constant 0 : index
    %65 = vector.load %arg2[%c6, %c0_46, %c0_47] : memref<8x128x128xf32, #tpu.memory_space<vmem>>, vector<1x128x128xf32>
    %66 = vector.shape_cast %65 : vector<1x128x128xf32> to vector<128x128xf32>
    %c6_48 = arith.constant 6 : index
    %c0_49 = arith.constant 0 : index
    %c0_50 = arith.constant 0 : index
    %67 = vector.load %arg3[%c6_48, %c0_49, %c0_50] : memref<8x1x128xf32, #tpu.memory_space<vmem>>, vector<1x1x128xf32>
    %68 = vector.shape_cast %67 : vector<1x1x128xf32> to vector<1x128xf32>
    %cst_51 = arith.constant dense<0.000000e+00> : vector<8x128xf32>
    %69 = tpu.matmul %64, %66, %cst_51 {dimension_numbers = #tpu.dot_dimension_numbers<[1], [0], [0], [1], [0, 0, 1, 1], [], []>} : vector<8x128xf32>, vector<128x128xf32>, vector<8x128xf32> -> vector<8x128xf32>
    %70 = vector.broadcast %68 : vector<1x128xf32> to vector<8x128xf32>
    %71 = arith.addf %69, %70 : vector<8x128xf32>
    %cst_52 = arith.constant 0.000000e+00 : f32
    %72 = vector.broadcast %cst_52 : f32 to vector<8x128xf32>
    %73 = arith.maximumf %71, %72 : vector<8x128xf32>
    %c7 = arith.constant 7 : index
    %c0_53 = arith.constant 0 : index
    %c0_54 = arith.constant 0 : index
    %74 = vector.load %arg2[%c7, %c0_53, %c0_54] : memref<8x128x128xf32, #tpu.memory_space<vmem>>, vector<1x128x128xf32>
    %75 = vector.shape_cast %74 : vector<1x128x128xf32> to vector<128x128xf32>
    %c7_55 = arith.constant 7 : index
    %c0_56 = arith.constant 0 : index
    %c0_57 = arith.constant 0 : index
    %76 = vector.load %arg3[%c7_55, %c0_56, %c0_57] : memref<8x1x128xf32, #tpu.memory_space<vmem>>, vector<1x1x128xf32>
    %77 = vector.shape_cast %76 : vector<1x1x128xf32> to vector<1x128xf32>
    %cst_58 = arith.constant dense<0.000000e+00> : vector<8x128xf32>
    %78 = tpu.matmul %73, %75, %cst_58 {dimension_numbers = #tpu.dot_dimension_numbers<[1], [0], [0], [1], [0, 0, 1, 1], [], []>} : vector<8x128xf32>, vector<128x128xf32>, vector<8x128xf32> -> vector<8x128xf32>
    %79 = vector.broadcast %77 : vector<1x128xf32> to vector<8x128xf32>
    %80 = arith.addf %78, %79 : vector<8x128xf32>
    %c0_59 = arith.constant 0 : index
    %c0_60 = arith.constant 0 : index
    %81 = vector.load %arg4[%c0_59, %c0_60] : memref<8x128xf32, #tpu.memory_space<vmem>>, vector<8x128xf32>
    tpu.vector_store %arg4[%c0_59, %c0_60], %80 {strides = array<i32>} : memref<8x128xf32, #tpu.memory_space<vmem>>, vector<8x128xf32>,
    return
  }
  func.func @transform_0(%arg0: i32) -> (i32, i32) {
    %c0_i32 = arith.constant 0 : i32
    %c0_i32_0 = arith.constant 0 : i32
    return %arg0, %c0_i32 : i32, i32
  }
  func.func @transform_1(%arg0: i32) -> (i32, i32, i32) {
    %c0_i32 = arith.constant 0 : i32
    %c0_i32_0 = arith.constant 0 : i32
    %c0_i32_1 = arith.constant 0 : i32
    %c0_i32_2 = arith.constant 0 : i32
    return %c0_i32, %c0_i32_0, %c0_i32_1 : i32, i32, i32
  }
  func.func @transform_2(%arg0: i32) -> (i32, i32, i32) {
    %c0_i32 = arith.constant 0 : i32
    %c0_i32_0 = arith.constant 0 : i32
    %c0_i32_1 = arith.constant 0 : i32
    %c0_i32_2 = arith.constant 0 : i32
    return %c0_i32, %c0_i32_0, %c0_i32_1 : i32, i32, i32
  }
  func.func @transform_3(%arg0: i32) -> (i32, i32) {
    %c0_i32 = arith.constant 0 : i32
    %c0_i32_0 = arith.constant 0 : i32
    return %arg0, %c0_i32 : i32, i32
  }
}

</mosaic_0001>

<llo_original>
// kernel: mapping_network.1
$region0: #{mapping_network.1}
  #allocation0 [shape = 'u32[]', space=smem, size = 0x4, offset = 0x4, fixed_abs, tag = 'smem constant byte address 0x4 - core index']
  #allocation1 [shape = 'u32[144,128]{1,0:T(1,128)}', space=vmem, size = 0x12000, scoped, tag = 'internal scratch']
  %s0 = inlined_call_operand.vmem [shape: f32[8,128], index: 0, kind: input, shape index: {}]
  %s1 = inlined_call_operand.hbm [shape: f32[8,128,128], index: 1, kind: input, shape index: {}]
  %s2 = inlined_call_operand.vmem [shape: f32[8,1,128], index: 2, kind: input, shape index: {}]
  %s3 = inlined_call_operand.hbm [shape: f32[8,128], index: 3, kind: output, shape index: {}]
  %s4 = sld [smem:[#allocation0]]
  $region26: #{mapping_network.1} parent=0
    _
  %s6 = ssub.s32 1, %s4
  %s7 = scalar_select 0, %s6, %s4
  $region1: #{mapping_network.1} parent=0
    #allocation2 [shape = 'u8[524288]{0}', space=vmem, size = 0x80000, scoped, tag = 'input window, operand 1, single buffered']
    #allocation3 [shape = 's32[1]{0}', space=sflag, size = 0x4, scoped, tag = 'scoped memory for mapping_network.1']
    #allocation4 [shape = 's32[1]{0}', space=sflag, size = 0x4, scoped, tag = 'scoped memory for mapping_network.1']
    #allocation5 [shape = 'u8[4096]{0}', space=vmem, size = 0x1000, scoped, tag = 'output window, operand 0, single buffered']
    %8 = vsyncpa [#allocation3], 0
    %9 = vsyncpa [#allocation4], 0
    // Predicated region
    $region2: #{mapping_network.1} parent=1 // pred_check
      _
    $region3: #{mapping_network.1} parent=1 // pred_check_branch
      %11 = sbr.rel (0) target = $region5
    $region4: #{mapping_network.1} parent=1 // pred_region
      _
    $region5: #{mapping_network.1} parent=1 // pred_fallthru
      _
    // Predicated region
    $region6: #{mapping_network.1} parent=1 // pred_check
      _
    $region7: #{mapping_network.1} parent=1 // pred_check_branch
      %13 = sbr.rel (0) target = $region9
    $region8: #{mapping_network.1} parent=1 // pred_region
      %s15 = ssub.s32 16384, 16384
      %16 = vsyncadd [#allocation3], %s15
      %s17 = sshll.u32 [#allocation2], 4
      %s18 = int_to_ptr.vmem [resolvable:$true] %s17
      %23 = dma.hbm_to_vmem [thread:$0]  %s1, 16384, %s18, [#allocation3], 128, 128, 8
    $region9: #{mapping_network.1} parent=1 // pred_fallthru
      _
    // Predicated region
    $region10: #{mapping_network.1} parent=1 // pred_check
      _
    $region11: #{mapping_network.1} parent=1 // pred_check_branch
      %25 = sbr.rel (0) target = $region13
    $region12: #{mapping_network.1} parent=1 // pred_region
      _
    $region13: #{mapping_network.1} parent=1 // pred_fallthru
      _
    // Predicated region
    $region14: #{mapping_network.1} parent=1 // pred_check
      _
    $region15: #{mapping_network.1} parent=1 // pred_check_branch
      %27 = sbr.rel (0) target = $region17
    $region16: #{mapping_network.1} parent=1 // pred_region
      %28 = dma.done [#allocation3], 16384
    $region17: #{mapping_network.1} parent=1 // pred_fallthru
      _
    %v29 = vld [vmem:[%s0] sm:$0xff]
    %v30 = vmul.f32 %v29, %v29
    %31 = vadd.xlane.f32.xlu0 %v30
    %v32 = vpop.xlane.xlu0 %31
    %v33 = vmul.f32 %v32, 0.03125
    %v34 = vadd.f32 %v33, 1e-08
    %v35 = vrsqrt.pop %v34
    %v36 = vmul.f32 %v29, %v35
    %v37 = vld [vmem:[#allocation2] sm:$0xff]
    %v38 = vld [vmem:[#allocation2 + $0x8] sm:$0xff]
    %v39 = vld [vmem:[#allocation2 + $0x10] sm:$0xff]
    %v40 = vld [vmem:[#allocation2 + $0x18] sm:$0xff]
    %v41 = vld [vmem:[#allocation2 + $0x20] sm:$0xff]
    %v42 = vld [vmem:[#allocation2 + $0x28] sm:$0xff]
    %v43 = vld [vmem:[#allocation2 + $0x30] sm:$0xff]
    %v44 = vld [vmem:[#allocation2 + $0x38] sm:$0xff]
    %v45 = vld [vmem:[#allocation2 + $0x40] sm:$0xff]
    %v46 = vld [vmem:[#allocation2 + $0x48] sm:$0xff]
    %v47 = vld [vmem:[#allocation2 + $0x50] sm:$0xff]
    %v48 = vld [vmem:[#allocation2 + $0x58] sm:$0xff]
    %v49 = vld [vmem:[#allocation2 + $0x60] sm:$0xff]
    %v50 = vld [vmem:[#allocation2 + $0x68] sm:$0xff]
    %v51 = vld [vmem:[#allocation2 + $0x70] sm:$0xff]
    %v52 = vld [vmem:[#allocation2 + $0x78] sm:$0xff]
    %v53 = vld [vmem:[%s2] sm:$0x1]
    %v55 = vlaneseq
    %v56 = vshrl.u32 %v55, 7
    %v57 = vsub.s32 0, %v56
    %v58 = vrot.slane %v53, %v57
    %60 = vmatprep.subr.mxu0 0.0
    %61 = vmatpush1.msra.mxu0 %v52
    %62 = vmatprep.subr.mxu0 0.0
    %63 = vmatpush1.msra.mxu0 %v51
    %64 = vmatprep.subr.mxu0 0.0
    %65 = vmatpush1.msra.mxu0 %v50
    %66 = vmatprep.subr.mxu0 0.0
    %67 = vmatpush1.msra.mxu0 %v49
    %68 = vmatprep.subr.mxu0 0.0
    %69 = vmatpush1.msra.mxu0 %v48
    %70 = vmatprep.subr.mxu0 0.0
    %71 = vmatpush1.msra.mxu0 %v47
    %72 = vmatprep.subr.mxu0 0.0
    %73 = vmatpush1.msra.mxu0 %v46
    %74 = vmatprep.subr.mxu0 0.0
    %75 = vmatpush1.msra.mxu0 %v45
    %76 = vmatprep.subr.mxu0 0.0
    %77 = vmatpush1.msra.mxu0 %v44
    %78 = vmatprep.subr.mxu0 0.0
    %79 = vmatpush1.msra.mxu0 %v43
    %80 = vmatprep.subr.mxu0 0.0
    %81 = vmatpush1.msra.mxu0 %v42
    %82 = vmatprep.subr.mxu0 0.0
    %83 = vmatpush1.msra.mxu0 %v41
    %84 = vmatprep.subr.mxu0 0.0
    %85 = vmatpush1.msra.mxu0 %v40
    %86 = vmatprep.subr.mxu0 0.0
    %87 = vmatpush1.msra.mxu0 %v39
    %88 = vmatprep.subr.mxu0 0.0
    %89 = vmatpush1.msra.mxu0 %v38
    %90 = vmatprep.subr.mxu0 0.0
    %91 = vmatpush1.msra.mxu0 %v37
    %92 = vmatprep.subr.mxu0 0.0
    %93 = vmatpush2.msra.mxu0 0.0
    %94 = vmatprep.subr.mxu0 0.0
    %95 = vmatpush2.msra.mxu0 0.0
    %96 = vmatprep.subr.mxu0 0.0
    %97 = vmatpush2.msra.mxu0 0.0
    %98 = vmatprep.subr.mxu0 0.0
    %99 = vmatpush2.msra.mxu0 0.0
    %100 = vmatprep.subr.mxu0 0.0
    %101 = vmatpush2.msra.mxu0 0.0
    %102 = vmatprep.subr.mxu0 0.0
    %103 = vmatpush2.msra.mxu0 0.0
    %104 = vmatprep.subr.mxu0 0.0
    %105 = vmatpush2.msra.mxu0 0.0
    %106 = vmatprep.subr.mxu0 0.0
    %107 = vmatpush2.msra.mxu0 0.0
    %108 = vmatprep.subr.mxu0 0.0
    %109 = vmatpush2.msra.mxu0 0.0
    %110 = vmatprep.subr.mxu0 0.0
    %111 = vmatpush2.msra.mxu0 0.0
    %112 = vmatprep.subr.mxu0 0.0
    %113 = vmatpush2.msra.mxu0 0.0
    %114 = vmatprep.subr.mxu0 0.0
    %115 = vmatpush2.msra.mxu0 0.0
    %116 = vmatprep.subr.mxu0 0.0
    %117 = vmatpush2.msra.mxu0 0.0
    %118 = vmatprep.subr.mxu0 0.0
    %119 = vmatpush2.msra.mxu0 0.0
    %120 = vmatprep.subr.mxu0 0.0
    %121 = vmatpush2.msra.mxu0 0.0
    %122 = vmatprep.subr.mxu0 0.0
    %123 = vmatpush2.msra.mxu0 0.0
    %124 = vmatprep.mubr.f32.mxu0 0.0
    %125 = vmatmul.mubr.f32.gmra.mxu0 %v36
    %v126 = vpop.f32.mrf.mxu0
    %v127 = vadd.f32 %v58, %v126
    %v128 = vpop.f32.mrf.mxu0
    %129 = vdwg.mxu0
    %v130 = vmax.f32 %v127, 0.0
    %s131 = scalar_lea.vmem [#allocation2], 128
    %v132 = vld [vmem:[%s131] sm:$0xff]
    %v133 = vld [vmem:[%s131 + $0x8] sm:$0xff]
    %v134 = vld [vmem:[%s131 + $0x10] sm:$0xff]
    %v135 = vld [vmem:[%s131 + $0x18] sm:$0xff]
    %v136 = vld [vmem:[%s131 + $0x20] sm:$0xff]
    %v137 = vld [vmem:[%s131 + $0x28] sm:$0xff]
    %v138 = vld [vmem:[%s131 + $0x30] sm:$0xff]
    %v139 = vld [vmem:[%s131 + $0x38] sm:$0xff]
    %v140 = vld [vmem:[%s131 + $0x40] sm:$0xff]
    %v141 = vld [vmem:[%s131 + $0x48] sm:$0xff]
    %v142 = vld [vmem:[%s131 + $0x50] sm:$0xff]
    %v143 = vld [vmem:[%s131 + $0x58] sm:$0xff]
    %v144 = vld [vmem:[%s131 + $0x60] sm:$0xff]
    %v145 = vld [vmem:[%s131 + $0x68] sm:$0xff]
    %v146 = vld [vmem:[%s131 + $0x70] sm:$0xff]
    %v147 = vld [vmem:[%s131 + $0x78] sm:$0xff]
    %s148 = scalar_lea.vmem %s2, 1
    %v149 = vld [vmem:[%s148] sm:$0x1]
    %v151 = vlaneseq
    %v152 = vshrl.u32 %v151, 7
    %v153 = vsub.s32 0, %v152
    %v154 = vrot.slane %v149, %v153
    %156 = vmatprep.subr.mxu0 0.0
    %157 = vmatpush1.msra.mxu0 %v147
    %158 = vmatprep.subr.mxu0 0.0
    %159 = vmatpush1.msra.mxu0 %v146
    %160 = vmatprep.subr.mxu0 0.0
    %161 = vmatpush1.msra.mxu0 %v145
    %162 = vmatprep.subr.mxu0 0.0
    %163 = vmatpush1.msra.mxu0 %v144
    %164 = vmatprep.subr.mxu0 0.0
    %165 = vmatpush1.msra.mxu0 %v143
    %166 = vmatprep.subr.mxu0 0.0
    %167 = vmatpush1.msra.mxu0 %v142
    %168 = vmatprep.subr.mxu0 0.0
    %169 = vmatpush1.msra.mxu0 %v141
    %170 = vmatprep.subr.mxu0 0.0
    %171 = vmatpush1.msra.mxu0 %v140
    %172 = vmatprep.subr.mxu0 0.0
    %173 = vmatpush1.msra.mxu0 %v139
    %174 = vmatprep.subr.mxu0 0.0
    %175 = vmatpush1.msra.mxu0 %v138
    %176 = vmatprep.subr.mxu0 0.0
    %177 = vmatpush1.msra.mxu0 %v137
    %178 = vmatprep.subr.mxu0 0.0
    %179 = vmatpush1.msra.mxu0 %v136
    %180 = vmatprep.subr.mxu0 0.0
    %181 = vmatpush1.msra.mxu0 %v135
    %182 = vmatprep.subr.mxu0 0.0
    %183 = vmatpush1.msra.mxu0 %v134
    %184 = vmatprep.subr.mxu0 0.0
    %185 = vmatpush1.msra.mxu0 %v133
    %186 = vmatprep.subr.mxu0 0.0
    %187 = vmatpush1.msra.mxu0 %v132
    %188 = vmatprep.subr.mxu0 0.0
    %189 = vmatpush2.msra.mxu0 0.0
    %190 = vmatprep.subr.mxu0 0.0
    %191 = vmatpush2.msra.mxu0 0.0
    %192 = vmatprep.subr.mxu0 0.0
    %193 = vmatpush2.msra.mxu0 0.0
    %194 = vmatprep.subr.mxu0 0.0
    %195 = vmatpush2.msra.mxu0 0.0
    %196 = vmatprep.subr.mxu0 0.0
    %197 = vmatpush2.msra.mxu0 0.0
    %198 = vmatprep.subr.mxu0 0.0
    %199 = vmatpush2.msra.mxu0 0.0
    %200 = vmatprep.subr.mxu0 0.0
    %201 = vmatpush2.msra.mxu0 0.0
    %202 = vmatprep.subr.mxu0 0.0
    %203 = vmatpush2.msra.mxu0 0.0
    %204 = vmatprep.subr.mxu0 0.0
    %205 = vmatpush2.msra.mxu0 0.0
    %206 = vmatprep.subr.mxu0 0.0
    %207 = vmatpush2.msra.mxu0 0.0
    %208 = vmatprep.subr.mxu0 0.0
    %209 = vmatpush2.msra.mxu0 0.0
    %210 = vmatprep.subr.mxu0 0.0
    %211 = vmatpush2.msra.mxu0 0.0
    %212 = vmatprep.subr.mxu0 0.0
    %213 = vmatpush2.msra.mxu0 0.0
    %214 = vmatprep.subr.mxu0 0.0
    %215 = vmatpush2.msra.mxu0 0.0
    %216 = vmatprep.subr.mxu0 0.0
    %217 = vmatpush2.msra.mxu0 0.0
    %218 = vmatprep.subr.mxu0 0.0
    %219 = vmatpush2.msra.mxu0 0.0
    %220 = vmatprep.mubr.f32.mxu0 0.0
    %221 = vmatmul.mubr.f32.gmra.mxu0 %v130
    %v222 = vpop.f32.mrf.mxu0
    %v223 = vadd.f32 %v154, %v222
    %v224 = vpop.f32.mrf.mxu0
    %225 = vdwg.mxu0
    %v226 = vmax.f32 %v223, 0.0
    %s227 = scalar_lea.vmem [#allocation2], 256
    %v228 = vld [vmem:[%s227] sm:$0xff]
    %v229 = vld [vmem:[%s227 + $0x8] sm:$0xff]
    %v230 = vld [vmem:[%s227 + $0x10] sm:$0xff]
    %v231 = vld [vmem:[%s227 + $0x18] sm:$0xff]
    %v232 = vld [vmem:[%s227 + $0x20] sm:$0xff]
    %v233 = vld [vmem:[%s227 + $0x28] sm:$0xff]
    %v234 = vld [vmem:[%s227 + $0x30] sm:$0xff]
    %v235 = vld [vmem:[%s227 + $0x38] sm:$0xff]
    %v236 = vld [vmem:[%s227 + $0x40] sm:$0xff]
    %v237 = vld [vmem:[%s227 + $0x48] sm:$0xff]
    %v238 = vld [vmem:[%s227 + $0x50] sm:$0xff]
    %v239 = vld [vmem:[%s227 + $0x58] sm:$0xff]
    %v240 = vld [vmem:[%s227 + $0x60] sm:$0xff]
    %v241 = vld [vmem:[%s227 + $0x68] sm:$0xff]
    %v242 = vld [vmem:[%s227 + $0x70] sm:$0xff]
    %v243 = vld [vmem:[%s227 + $0x78] sm:$0xff]
    %s244 = scalar_lea.vmem %s2, 2
    %v245 = vld [vmem:[%s244] sm:$0x1]
    %v247 = vlaneseq
    %v248 = vshrl.u32 %v247, 7
    %v249 = vsub.s32 0, %v248
    %v250 = vrot.slane %v245, %v249
    %252 = vmatprep.subr.mxu0 0.0
    %253 = vmatpush1.msra.mxu0 %v243
    %254 = vmatprep.subr.mxu0 0.0
    %255 = vmatpush1.msra.mxu0 %v242
    %256 = vmatprep.subr.mxu0 0.0
    %257 = vmatpush1.msra.mxu0 %v241
    %258 = vmatprep.subr.mxu0 0.0
    %259 = vmatpush1.msra.mxu0 %v240
    %260 = vmatprep.subr.mxu0 0.0
    %261 = vmatpush1.msra.mxu0 %v239
    %262 = vmatprep.subr.mxu0 0.0
    %263 = vmatpush1.msra.mxu0 %v238
    %264 = vmatprep.subr.mxu0 0.0
    %265 = vmatpush1.msra.mxu0 %v237
    %266 = vmatprep.subr.mxu0 0.0
    %267 = vmatpush1.msra.mxu0 %v236
    %268 = vmatprep.subr.mxu0 0.0
    %269 = vmatpush1.msra.mxu0 %v235
    %270 = vmatprep.subr.mxu0 0.0
    %271 = vmatpush1.msra.mxu0 %v234
    %272 = vmatprep.subr.mxu0 0.0
    %273 = vmatpush1.msra.mxu0 %v233
    %274 = vmatprep.subr.mxu0 0.0
    %275 = vmatpush1.msra.mxu0 %v232
    %276 = vmatprep.subr.mxu0 0.0
    %277 = vmatpush1.msra.mxu0 %v231
    %278 = vmatprep.subr.mxu0 0.0
    %279 = vmatpush1.msra.mxu0 %v230
    %280 = vmatprep.subr.mxu0 0.0
    %281 = vmatpush1.msra.mxu0 %v229
    %282 = vmatprep.subr.mxu0 0.0
    %283 = vmatpush1.msra.mxu0 %v228
    %284 = vmatprep.subr.mxu0 0.0
    %285 = vmatpush2.msra.mxu0 0.0
    %286 = vmatprep.subr.mxu0 0.0
    %287 = vmatpush2.msra.mxu0 0.0
    %288 = vmatprep.subr.mxu0 0.0
    %289 = vmatpush2.msra.mxu0 0.0
    %290 = vmatprep.subr.mxu0 0.0
    %291 = vmatpush2.msra.mxu0 0.0
    %292 = vmatprep.subr.mxu0 0.0
    %293 = vmatpush2.msra.mxu0 0.0
    %294 = vmatprep.subr.mxu0 0.0
    %295 = vmatpush2.msra.mxu0 0.0
    %296 = vmatprep.subr.mxu0 0.0
    %297 = vmatpush2.msra.mxu0 0.0
    %298 = vmatprep.subr.mxu0 0.0
    %299 = vmatpush2.msra.mxu0 0.0
    %300 = vmatprep.subr.mxu0 0.0
    %301 = vmatpush2.msra.mxu0 0.0
    %302 = vmatprep.subr.mxu0 0.0
    %303 = vmatpush2.msra.mxu0 0.0
    %304 = vmatprep.subr.mxu0 0.0
    %305 = vmatpush2.msra.mxu0 0.0
    %306 = vmatprep.subr.mxu0 0.0
    %307 = vmatpush2.msra.mxu0 0.0
    %308 = vmatprep.subr.mxu0 0.0
    %309 = vmatpush2.msra.mxu0 0.0
    %310 = vmatprep.subr.mxu0 0.0
    %311 = vmatpush2.msra.mxu0 0.0
    %312 = vmatprep.subr.mxu0 0.0
    %313 = vmatpush2.msra.mxu0 0.0
    %314 = vmatprep.subr.mxu0 0.0
    %315 = vmatpush2.msra.mxu0 0.0
    %316 = vmatprep.mubr.f32.mxu0 0.0
    %317 = vmatmul.mubr.f32.gmra.mxu0 %v226
    %v318 = vpop.f32.mrf.mxu0
    %v319 = vadd.f32 %v250, %v318
    %v320 = vpop.f32.mrf.mxu0
    %321 = vdwg.mxu0
    %v322 = vmax.f32 %v319, 0.0
    %s323 = scalar_lea.vmem [#allocation2], 384
    %v324 = vld [vmem:[%s323] sm:$0xff]
    %v325 = vld [vmem:[%s323 + $0x8] sm:$0xff]
    %v326 = vld [vmem:[%s323 + $0x10] sm:$0xff]
    %v327 = vld [vmem:[%s323 + $0x18] sm:$0xff]
    %v328 = vld [vmem:[%s323 + $0x20] sm:$0xff]
    %v329 = vld [vmem:[%s323 + $0x28] sm:$0xff]
    %v330 = vld [vmem:[%s323 + $0x30] sm:$0xff]
    %v331 = vld [vmem:[%s323 + $0x38] sm:$0xff]
    %v332 = vld [vmem:[%s323 + $0x40] sm:$0xff]
    %v333 = vld [vmem:[%s323 + $0x48] sm:$0xff]
    %v334 = vld [vmem:[%s323 + $0x50] sm:$0xff]
    %v335 = vld [vmem:[%s323 + $0x58] sm:$0xff]
    %v336 = vld [vmem:[%s323 + $0x60] sm:$0xff]
    %v337 = vld [vmem:[%s323 + $0x68] sm:$0xff]
    %v338 = vld [vmem:[%s323 + $0x70] sm:$0xff]
    %v339 = vld [vmem:[%s323 + $0x78] sm:$0xff]
    %s340 = scalar_lea.vmem %s2, 3
    %v341 = vld [vmem:[%s340] sm:$0x1]
    %v343 = vlaneseq
    %v344 = vshrl.u32 %v343, 7
    %v345 = vsub.s32 0, %v344
    %v346 = vrot.slane %v341, %v345
    %348 = vmatprep.subr.mxu0 0.0
    %349 = vmatpush1.msra.mxu0 %v339
    %350 = vmatprep.subr.mxu0 0.0
    %351 = vmatpush1.msra.mxu0 %v338
    %352 = vmatprep.subr.mxu0 0.0
    %353 = vmatpush1.msra.mxu0 %v337
    %354 = vmatprep.subr.mxu0 0.0
    %355 = vmatpush1.msra.mxu0 %v336
    %356 = vmatprep.subr.mxu0 0.0
    %357 = vmatpush1.msra.mxu0 %v335
    %358 = vmatprep.subr.mxu0 0.0
    %359 = vmatpush1.msra.mxu0 %v334
    %360 = vmatprep.subr.mxu0 0.0
    %361 = vmatpush1.msra.mxu0 %v333
    %362 = vmatprep.subr.mxu0 0.0
    %363 = vmatpush1.msra.mxu0 %v332
    %364 = vmatprep.subr.mxu0 0.0
    %365 = vmatpush1.msra.mxu0 %v331
    %366 = vmatprep.subr.mxu0 0.0
    %367 = vmatpush1.msra.mxu0 %v330
    %368 = vmatprep.subr.mxu0 0.0
    %369 = vmatpush1.msra.mxu0 %v329
    %370 = vmatprep.subr.mxu0 0.0
    %371 = vmatpush1.msra.mxu0 %v328
    %372 = vmatprep.subr.mxu0 0.0
    %373 = vmatpush1.msra.mxu0 %v327
    %374 = vmatprep.subr.mxu0 0.0
    %375 = vmatpush1.msra.mxu0 %v326
    %376 = vmatprep.subr.mxu0 0.0
    %377 = vmatpush1.msra.mxu0 %v325
    %378 = vmatprep.subr.mxu0 0.0
    %379 = vmatpush1.msra.mxu0 %v324
    %380 = vmatprep.subr.mxu0 0.0
    %381 = vmatpush2.msra.mxu0 0.0
    %382 = vmatprep.subr.mxu0 0.0
    %383 = vmatpush2.msra.mxu0 0.0
    %384 = vmatprep.subr.mxu0 0.0
    %385 = vmatpush2.msra.mxu0 0.0
    %386 = vmatprep.subr.mxu0 0.0
    %387 = vmatpush2.msra.mxu0 0.0
    %388 = vmatprep.subr.mxu0 0.0
    %389 = vmatpush2.msra.mxu0 0.0
    %390 = vmatprep.subr.mxu0 0.0
    %391 = vmatpush2.msra.mxu0 0.0
    %392 = vmatprep.subr.mxu0 0.0
    %393 = vmatpush2.msra.mxu0 0.0
    %394 = vmatprep.subr.mxu0 0.0
    %395 = vmatpush2.msra.mxu0 0.0
    %396 = vmatprep.subr.mxu0 0.0
    %397 = vmatpush2.msra.mxu0 0.0
    %398 = vmatprep.subr.mxu0 0.0
    %399 = vmatpush2.msra.mxu0 0.0
    %400 = vmatprep.subr.mxu0 0.0
    %401 = vmatpush2.msra.mxu0 0.0
    %402 = vmatprep.subr.mxu0 0.0
    %403 = vmatpush2.msra.mxu0 0.0
    %404 = vmatprep.subr.mxu0 0.0
    %405 = vmatpush2.msra.mxu0 0.0
    %406 = vmatprep.subr.mxu0 0.0
    %407 = vmatpush2.msra.mxu0 0.0
    %408 = vmatprep.subr.mxu0 0.0
    %409 = vmatpush2.msra.mxu0 0.0
    %410 = vmatprep.subr.mxu0 0.0
    %411 = vmatpush2.msra.mxu0 0.0
    %412 = vmatprep.mubr.f32.mxu0 0.0
    %413 = vmatmul.mubr.f32.gmra.mxu0 %v322
    %v414 = vpop.f32.mrf.mxu0
    %v415 = vadd.f32 %v346, %v414
    %v416 = vpop.f32.mrf.mxu0
    %417 = vdwg.mxu0
    %v418 = vmax.f32 %v415, 0.0
    %s419 = scalar_lea.vmem [#allocation2], 512
    %v420 = vld [vmem:[%s419] sm:$0xff]
    %v421 = vld [vmem:[%s419 + $0x8] sm:$0xff]
    %v422 = vld [vmem:[%s419 + $0x10] sm:$0xff]
    %v423 = vld [vmem:[%s419 + $0x18] sm:$0xff]
    %v424 = vld [vmem:[%s419 + $0x20] sm:$0xff]
    %v425 = vld [vmem:[%s419 + $0x28] sm:$0xff]
    %v426 = vld [vmem:[%s419 + $0x30] sm:$0xff]
    %v427 = vld [vmem:[%s419 + $0x38] sm:$0xff]
    %v428 = vld [vmem:[%s419 + $0x40] sm:$0xff]
    %v429 = vld [vmem:[%s419 + $0x48] sm:$0xff]
    %v430 = vld [vmem:[%s419 + $0x50] sm:$0xff]
    %v431 = vld [vmem:[%s419 + $0x58] sm:$0xff]
    %v432 = vld [vmem:[%s419 + $0x60] sm:$0xff]
    %v433 = vld [vmem:[%s419 + $0x68] sm:$0xff]
    %v434 = vld [vmem:[%s419 + $0x70] sm:$0xff]
    %v435 = vld [vmem:[%s419 + $0x78] sm:$0xff]
    %s436 = scalar_lea.vmem %s2, 4
    %v437 = vld [vmem:[%s436] sm:$0x1]
    %v439 = vlaneseq
    %v440 = vshrl.u32 %v439, 7
    %v441 = vsub.s32 0, %v440
    %v442 = vrot.slane %v437, %v441
    %444 = vmatprep.subr.mxu0 0.0
    %445 = vmatpush1.msra.mxu0 %v435
    %446 = vmatprep.subr.mxu0 0.0
    %447 = vmatpush1.msra.mxu0 %v434
    %448 = vmatprep.subr.mxu0 0.0
    %449 = vmatpush1.msra.mxu0 %v433
    %450 = vmatprep.subr.mxu0 0.0
    %451 = vmatpush1.msra.mxu0 %v432
    %452 = vmatprep.subr.mxu0 0.0
    %453 = vmatpush1.msra.mxu0 %v431
    %454 = vmatprep.subr.mxu0 0.0
    %455 = vmatpush1.msra.mxu0 %v430
    %456 = vmatprep.subr.mxu0 0.0
    %457 = vmatpush1.msra.mxu0 %v429
    %458 = vmatprep.subr.mxu0 0.0
    %459 = vmatpush1.msra.mxu0 %v428
    %460 = vmatprep.subr.mxu0 0.0
    %461 = vmatpush1.msra.mxu0 %v427
    %462 = vmatprep.subr.mxu0 0.0
    %463 = vmatpush1.msra.mxu0 %v426
    %464 = vmatprep.subr.mxu0 0.0
    %465 = vmatpush1.msra.mxu0 %v425
    %466 = vmatprep.subr.mxu0 0.0
    %467 = vmatpush1.msra.mxu0 %v424
    %468 = vmatprep.subr.mxu0 0.0
    %469 = vmatpush1.msra.mxu0 %v423
    %470 = vmatprep.subr.mxu0 0.0
    %471 = vmatpush1.msra.mxu0 %v422
    %472 = vmatprep.subr.mxu0 0.0
    %473 = vmatpush1.msra.mxu0 %v421
    %474 = vmatprep.subr.mxu0 0.0
    %475 = vmatpush1.msra.mxu0 %v420
    %476 = vmatprep.subr.mxu0 0.0
    %477 = vmatpush2.msra.mxu0 0.0
    %478 = vmatprep.subr.mxu0 0.0
    %479 = vmatpush2.msra.mxu0 0.0
    %480 = vmatprep.subr.mxu0 0.0
    %481 = vmatpush2.msra.mxu0 0.0
    %482 = vmatprep.subr.mxu0 0.0
    %483 = vmatpush2.msra.mxu0 0.0
    %484 = vmatprep.subr.mxu0 0.0
    %485 = vmatpush2.msra.mxu0 0.0
    %486 = vmatprep.subr.mxu0 0.0
    %487 = vmatpush2.msra.mxu0 0.0
    %488 = vmatprep.subr.mxu0 0.0
    %489 = vmatpush2.msra.mxu0 0.0
    %490 = vmatprep.subr.mxu0 0.0
    %491 = vmatpush2.msra.mxu0 0.0
    %492 = vmatprep.subr.mxu0 0.0
    %493 = vmatpush2.msra.mxu0 0.0
    %494 = vmatprep.subr.mxu0 0.0
    %495 = vmatpush2.msra.mxu0 0.0
    %496 = vmatprep.subr.mxu0 0.0
    %497 = vmatpush2.msra.mxu0 0.0
    %498 = vmatprep.subr.mxu0 0.0
    %499 = vmatpush2.msra.mxu0 0.0
    %500 = vmatprep.subr.mxu0 0.0
    %501 = vmatpush2.msra.mxu0 0.0
    %502 = vmatprep.subr.mxu0 0.0
    %503 = vmatpush2.msra.mxu0 0.0
    %504 = vmatprep.subr.mxu0 0.0
    %505 = vmatpush2.msra.mxu0 0.0
    %506 = vmatprep.subr.mxu0 0.0
    %507 = vmatpush2.msra.mxu0 0.0
    %508 = vmatprep.mubr.f32.mxu0 0.0
    %509 = vmatmul.mubr.f32.gmra.mxu0 %v418
    %v510 = vpop.f32.mrf.mxu0
    %v511 = vadd.f32 %v442, %v510
    %v512 = vpop.f32.mrf.mxu0
    %513 = vdwg.mxu0
    %v514 = vmax.f32 %v511, 0.0
    %s515 = scalar_lea.vmem [#allocation2], 640
    %v516 = vld [vmem:[%s515] sm:$0xff]
    %v517 = vld [vmem:[%s515 + $0x8] sm:$0xff]
    %v518 = vld [vmem:[%s515 + $0x10] sm:$0xff]
    %v519 = vld [vmem:[%s515 + $0x18] sm:$0xff]
    %v520 = vld [vmem:[%s515 + $0x20] sm:$0xff]
    %v521 = vld [vmem:[%s515 + $0x28] sm:$0xff]
    %v522 = vld [vmem:[%s515 + $0x30] sm:$0xff]
    %v523 = vld [vmem:[%s515 + $0x38] sm:$0xff]
    %v524 = vld [vmem:[%s515 + $0x40] sm:$0xff]
    %v525 = vld [vmem:[%s515 + $0x48] sm:$0xff]
    %v526 = vld [vmem:[%s515 + $0x50] sm:$0xff]
    %v527 = vld [vmem:[%s515 + $0x58] sm:$0xff]
    %v528 = vld [vmem:[%s515 + $0x60] sm:$0xff]
    %v529 = vld [vmem:[%s515 + $0x68] sm:$0xff]
    %v530 = vld [vmem:[%s515 + $0x70] sm:$0xff]
    %v531 = vld [vmem:[%s515 + $0x78] sm:$0xff]
    %s532 = scalar_lea.vmem %s2, 5
    %v533 = vld [vmem:[%s532] sm:$0x1]
    %v535 = vlaneseq
    %v536 = vshrl.u32 %v535, 7
    %v537 = vsub.s32 0, %v536
    %v538 = vrot.slane %v533, %v537
    %540 = vmatprep.subr.mxu0 0.0
    %541 = vmatpush1.msra.mxu0 %v531
    %542 = vmatprep.subr.mxu0 0.0
    %543 = vmatpush1.msra.mxu0 %v530
    %544 = vmatprep.subr.mxu0 0.0
    %545 = vmatpush1.msra.mxu0 %v529
    %546 = vmatprep.subr.mxu0 0.0
    %547 = vmatpush1.msra.mxu0 %v528
    %548 = vmatprep.subr.mxu0 0.0
    %549 = vmatpush1.msra.mxu0 %v527
    %550 = vmatprep.subr.mxu0 0.0
    %551 = vmatpush1.msra.mxu0 %v526
    %552 = vmatprep.subr.mxu0 0.0
    %553 = vmatpush1.msra.mxu0 %v525
    %554 = vmatprep.subr.mxu0 0.0
    %555 = vmatpush1.msra.mxu0 %v524
    %556 = vmatprep.subr.mxu0 0.0
    %557 = vmatpush1.msra.mxu0 %v523
    %558 = vmatprep.subr.mxu0 0.0
    %559 = vmatpush1.msra.mxu0 %v522
    %560 = vmatprep.subr.mxu0 0.0
    %561 = vmatpush1.msra.mxu0 %v521
    %562 = vmatprep.subr.mxu0 0.0
    %563 = vmatpush1.msra.mxu0 %v520
    %564 = vmatprep.subr.mxu0 0.0
    %565 = vmatpush1.msra.mxu0 %v519
    %566 = vmatprep.subr.mxu0 0.0
    %567 = vmatpush1.msra.mxu0 %v518
    %568 = vmatprep.subr.mxu0 0.0
    %569 = vmatpush1.msra.mxu0 %v517
    %570 = vmatprep.subr.mxu0 0.0
    %571 = vmatpush1.msra.mxu0 %v516
    %572 = vmatprep.subr.mxu0 0.0
    %573 = vmatpush2.msra.mxu0 0.0
    %574 = vmatprep.subr.mxu0 0.0
    %575 = vmatpush2.msra.mxu0 0.0
    %576 = vmatprep.subr.mxu0 0.0
    %577 = vmatpush2.msra.mxu0 0.0
    %578 = vmatprep.subr.mxu0 0.0
    %579 = vmatpush2.msra.mxu0 0.0
    %580 = vmatprep.subr.mxu0 0.0
    %581 = vmatpush2.msra.mxu0 0.0
    %582 = vmatprep.subr.mxu0 0.0
    %583 = vmatpush2.msra.mxu0 0.0
    %584 = vmatprep.subr.mxu0 0.0
    %585 = vmatpush2.msra.mxu0 0.0
    %586 = vmatprep.subr.mxu0 0.0
    %587 = vmatpush2.msra.mxu0 0.0
    %588 = vmatprep.subr.mxu0 0.0
    %589 = vmatpush2.msra.mxu0 0.0
    %590 = vmatprep.subr.mxu0 0.0
    %591 = vmatpush2.msra.mxu0 0.0
    %592 = vmatprep.subr.mxu0 0.0
    %593 = vmatpush2.msra.mxu0 0.0
    %594 = vmatprep.subr.mxu0 0.0
    %595 = vmatpush2.msra.mxu0 0.0
    %596 = vmatprep.subr.mxu0 0.0
    %597 = vmatpush2.msra.mxu0 0.0
    %598 = vmatprep.subr.mxu0 0.0
    %599 = vmatpush2.msra.mxu0 0.0
    %600 = vmatprep.subr.mxu0 0.0
    %601 = vmatpush2.msra.mxu0 0.0
    %602 = vmatprep.subr.mxu0 0.0
    %603 = vmatpush2.msra.mxu0 0.0
    %604 = vmatprep.mubr.f32.mxu0 0.0
    %605 = vmatmul.mubr.f32.gmra.mxu0 %v514
    %v606 = vpop.f32.mrf.mxu0
    %v607 = vadd.f32 %v538, %v606
    %v608 = vpop.f32.mrf.mxu0
    %609 = vdwg.mxu0
    %v610 = vmax.f32 %v607, 0.0
    %s611 = scalar_lea.vmem [#allocation2], 768
    %v612 = vld [vmem:[%s611] sm:$0xff]
    %v613 = vld [vmem:[%s611 + $0x8] sm:$0xff]
    %v614 = vld [vmem:[%s611 + $0x10] sm:$0xff]
    %v615 = vld [vmem:[%s611 + $0x18] sm:$0xff]
    %v616 = vld [vmem:[%s611 + $0x20] sm:$0xff]
    %v617 = vld [vmem:[%s611 + $0x28] sm:$0xff]
    %v618 = vld [vmem:[%s611 + $0x30] sm:$0xff]
    %v619 = vld [vmem:[%s611 + $0x38] sm:$0xff]
    %v620 = vld [vmem:[%s611 + $0x40] sm:$0xff]
    %v621 = vld [vmem:[%s611 + $0x48] sm:$0xff]
    %v622 = vld [vmem:[%s611 + $0x50] sm:$0xff]
    %v623 = vld [vmem:[%s611 + $0x58] sm:$0xff]
    %v624 = vld [vmem:[%s611 + $0x60] sm:$0xff]
    %v625 = vld [vmem:[%s611 + $0x68] sm:$0xff]
    %v626 = vld [vmem:[%s611 + $0x70] sm:$0xff]
    %v627 = vld [vmem:[%s611 + $0x78] sm:$0xff]
    %s628 = scalar_lea.vmem %s2, 6
    %v629 = vld [vmem:[%s628] sm:$0x1]
    %v631 = vlaneseq
    %v632 = vshrl.u32 %v631, 7
    %v633 = vsub.s32 0, %v632
    %v634 = vrot.slane %v629, %v633
    %636 = vmatprep.subr.mxu0 0.0
    %637 = vmatpush1.msra.mxu0 %v627
    %638 = vmatprep.subr.mxu0 0.0
    %639 = vmatpush1.msra.mxu0 %v626
    %640 = vmatprep.subr.mxu0 0.0
    %641 = vmatpush1.msra.mxu0 %v625
    %642 = vmatprep.subr.mxu0 0.0
    %643 = vmatpush1.msra.mxu0 %v624
    %644 = vmatprep.subr.mxu0 0.0
    %645 = vmatpush1.msra.mxu0 %v623
    %646 = vmatprep.subr.mxu0 0.0
    %647 = vmatpush1.msra.mxu0 %v622
    %648 = vmatprep.subr.mxu0 0.0
    %649 = vmatpush1.msra.mxu0 %v621
    %650 = vmatprep.subr.mxu0 0.0
    %651 = vmatpush1.msra.mxu0 %v620
    %652 = vmatprep.subr.mxu0 0.0
    %653 = vmatpush1.msra.mxu0 %v619
    %654 = vmatprep.subr.mxu0 0.0
    %655 = vmatpush1.msra.mxu0 %v618
    %656 = vmatprep.subr.mxu0 0.0
    %657 = vmatpush1.msra.mxu0 %v617
    %658 = vmatprep.subr.mxu0 0.0
    %659 = vmatpush1.msra.mxu0 %v616
    %660 = vmatprep.subr.mxu0 0.0
    %661 = vmatpush1.msra.mxu0 %v615
    %662 = vmatprep.subr.mxu0 0.0
    %663 = vmatpush1.msra.mxu0 %v614
    %664 = vmatprep.subr.mxu0 0.0
    %665 = vmatpush1.msra.mxu0 %v613
    %666 = vmatprep.subr.mxu0 0.0
    %667 = vmatpush1.msra.mxu0 %v612
    %668 = vmatprep.subr.mxu0 0.0
    %669 = vmatpush2.msra.mxu0 0.0
    %670 = vmatprep.subr.mxu0 0.0
    %671 = vmatpush2.msra.mxu0 0.0
    %672 = vmatprep.subr.mxu0 0.0
    %673 = vmatpush2.msra.mxu0 0.0
    %674 = vmatprep.subr.mxu0 0.0
    %675 = vmatpush2.msra.mxu0 0.0
    %676 = vmatprep.subr.mxu0 0.0
    %677 = vmatpush2.msra.mxu0 0.0
    %678 = vmatprep.subr.mxu0 0.0
    %679 = vmatpush2.msra.mxu0 0.0
    %680 = vmatprep.subr.mxu0 0.0
    %681 = vmatpush2.msra.mxu0 0.0
    %682 = vmatprep.subr.mxu0 0.0
    %683 = vmatpush2.msra.mxu0 0.0
    %684 = vmatprep.subr.mxu0 0.0
    %685 = vmatpush2.msra.mxu0 0.0
    %686 = vmatprep.subr.mxu0 0.0
    %687 = vmatpush2.msra.mxu0 0.0
    %688 = vmatprep.subr.mxu0 0.0
    %689 = vmatpush2.msra.mxu0 0.0
    %690 = vmatprep.subr.mxu0 0.0
    %691 = vmatpush2.msra.mxu0 0.0
    %692 = vmatprep.subr.mxu0 0.0
    %693 = vmatpush2.msra.mxu0 0.0
    %694 = vmatprep.subr.mxu0 0.0
    %695 = vmatpush2.msra.mxu0 0.0
    %696 = vmatprep.subr.mxu0 0.0
    %697 = vmatpush2.msra.mxu0 0.0
    %698 = vmatprep.subr.mxu0 0.0
    %699 = vmatpush2.msra.mxu0 0.0
    %700 = vmatprep.mubr.f32.mxu0 0.0
    %701 = vmatmul.mubr.f32.gmra.mxu0 %v610
    %v702 = vpop.f32.mrf.mxu0
    %v703 = vadd.f32 %v634, %v702
    %v704 = vpop.f32.mrf.mxu0
    %705 = vdwg.mxu0
    %v706 = vmax.f32 %v703, 0.0
    %s707 = scalar_lea.vmem [#allocation2], 896
    %v708 = vld [vmem:[%s707] sm:$0xff]
    %v709 = vld [vmem:[%s707 + $0x8] sm:$0xff]
    %v710 = vld [vmem:[%s707 + $0x10] sm:$0xff]
    %v711 = vld [vmem:[%s707 + $0x18] sm:$0xff]
    %v712 = vld [vmem:[%s707 + $0x20] sm:$0xff]
    %v713 = vld [vmem:[%s707 + $0x28] sm:$0xff]
    %v714 = vld [vmem:[%s707 + $0x30] sm:$0xff]
    %v715 = vld [vmem:[%s707 + $0x38] sm:$0xff]
    %v716 = vld [vmem:[%s707 + $0x40] sm:$0xff]
    %v717 = vld [vmem:[%s707 + $0x48] sm:$0xff]
    %v718 = vld [vmem:[%s707 + $0x50] sm:$0xff]
    %v719 = vld [vmem:[%s707 + $0x58] sm:$0xff]
    %v720 = vld [vmem:[%s707 + $0x60] sm:$0xff]
    %v721 = vld [vmem:[%s707 + $0x68] sm:$0xff]
    %v722 = vld [vmem:[%s707 + $0x70] sm:$0xff]
    %v723 = vld [vmem:[%s707 + $0x78] sm:$0xff]
    %s724 = scalar_lea.vmem %s2, 7
    %v725 = vld [vmem:[%s724] sm:$0x1]
    %v727 = vlaneseq
    %v728 = vshrl.u32 %v727, 7
    %v729 = vsub.s32 0, %v728
    %v730 = vrot.slane %v725, %v729
    %732 = vmatprep.subr.mxu0 0.0
    %733 = vmatpush1.msra.mxu0 %v723
    %734 = vmatprep.subr.mxu0 0.0
    %735 = vmatpush1.msra.mxu0 %v722
    %736 = vmatprep.subr.mxu0 0.0
    %737 = vmatpush1.msra.mxu0 %v721
    %738 = vmatprep.subr.mxu0 0.0
    %739 = vmatpush1.msra.mxu0 %v720
    %740 = vmatprep.subr.mxu0 0.0
    %741 = vmatpush1.msra.mxu0 %v719
    %742 = vmatprep.subr.mxu0 0.0
    %743 = vmatpush1.msra.mxu0 %v718
    %744 = vmatprep.subr.mxu0 0.0
    %745 = vmatpush1.msra.mxu0 %v717
    %746 = vmatprep.subr.mxu0 0.0
    %747 = vmatpush1.msra.mxu0 %v716
    %748 = vmatprep.subr.mxu0 0.0
    %749 = vmatpush1.msra.mxu0 %v715
    %750 = vmatprep.subr.mxu0 0.0
    %751 = vmatpush1.msra.mxu0 %v714
    %752 = vmatprep.subr.mxu0 0.0
    %753 = vmatpush1.msra.mxu0 %v713
    %754 = vmatprep.subr.mxu0 0.0
    %755 = vmatpush1.msra.mxu0 %v712
    %756 = vmatprep.subr.mxu0 0.0
    %757 = vmatpush1.msra.mxu0 %v711
    %758 = vmatprep.subr.mxu0 0.0
    %759 = vmatpush1.msra.mxu0 %v710
    %760 = vmatprep.subr.mxu0 0.0
    %761 = vmatpush1.msra.mxu0 %v709
    %762 = vmatprep.subr.mxu0 0.0
    %763 = vmatpush1.msra.mxu0 %v708
    %764 = vmatprep.subr.mxu0 0.0
    %765 = vmatpush2.msra.mxu0 0.0
    %766 = vmatprep.subr.mxu0 0.0
    %767 = vmatpush2.msra.mxu0 0.0
    %768 = vmatprep.subr.mxu0 0.0
    %769 = vmatpush2.msra.mxu0 0.0
    %770 = vmatprep.subr.mxu0 0.0
    %771 = vmatpush2.msra.mxu0 0.0
    %772 = vmatprep.subr.mxu0 0.0
    %773 = vmatpush2.msra.mxu0 0.0
    %774 = vmatprep.subr.mxu0 0.0
    %775 = vmatpush2.msra.mxu0 0.0
    %776 = vmatprep.subr.mxu0 0.0
    %777 = vmatpush2.msra.mxu0 0.0
    %778 = vmatprep.subr.mxu0 0.0
    %779 = vmatpush2.msra.mxu0 0.0
    %780 = vmatprep.subr.mxu0 0.0
    %781 = vmatpush2.msra.mxu0 0.0
    %782 = vmatprep.subr.mxu0 0.0
    %783 = vmatpush2.msra.mxu0 0.0
    %784 = vmatprep.subr.mxu0 0.0
    %785 = vmatpush2.msra.mxu0 0.0
    %786 = vmatprep.subr.mxu0 0.0
    %787 = vmatpush2.msra.mxu0 0.0
    %788 = vmatprep.subr.mxu0 0.0
    %789 = vmatpush2.msra.mxu0 0.0
    %790 = vmatprep.subr.mxu0 0.0
    %791 = vmatpush2.msra.mxu0 0.0
    %792 = vmatprep.subr.mxu0 0.0
    %793 = vmatpush2.msra.mxu0 0.0
    %794 = vmatprep.subr.mxu0 0.0
    %795 = vmatpush2.msra.mxu0 0.0
    %796 = vmatprep.mubr.f32.mxu0 0.0
    %797 = vmatmul.mubr.f32.gmra.mxu0 %v706
    %v798 = vpop.f32.mrf.mxu0
    %v799 = vadd.f32 %v730, %v798
    %v800 = vpop.f32.mrf.mxu0
    %801 = vdwg.mxu0
    %802 = vst [vmem:[#allocation5] sm:$0xff] %v799
    // Predicated region
    $region18: #{mapping_network.1} parent=1 // pred_check
      _
    $region19: #{mapping_network.1} parent=1 // pred_check_branch
      %804 = sbr.rel (0) target = $region21
    $region20: #{mapping_network.1} parent=1 // pred_region
      %s806 = ssub.s32 128, 128
      %807 = vsyncadd [#allocation4], %s806
      %s809 = sshll.u32 [#allocation5], 4
      %s810 = int_to_ptr.vmem [resolvable:$true] %s809
      %812 = dma.vmem_to_hbm [thread:$0]  %s810, 128, %s3, [#allocation4]
    $region21: #{mapping_network.1} parent=1 // pred_fallthru
      _
    // Predicated region
    $region22: #{mapping_network.1} parent=1 // pred_check
      _
    $region23: #{mapping_network.1} parent=1 // pred_check_branch
      %814 = sbr.rel (0) target = $region25
    $region24: #{mapping_network.1} parent=1 // pred_region
      %815 = dma.done [#allocation4], 128
    $region25: #{mapping_network.1} parent=1 // pred_fallthru
      _
    %816 = vsyncpa [#allocation3], 1
    %817 = vsyncpa [#allocation4], 1

</llo_original>
